<compile_context>
chip_gen: v7x
topology: tpu7x:2x2x1
jax: 0.10.0
libtpu: 0.0.40
codegen_flags: <defaults>
</compile_context>

<pallas_src>
import functools

import jax
import jax.numpy as jnp
import numpy as np
from jax import lax
from jax.experimental import pallas as pl
from jax.experimental.pallas import tpu as pltpu


def _round_up(a, b):
    return (a + b - 1) // b * b


def _sublane_multiple(dtype):
    # Packed sublane tiling: f32 -> 8 rows, bf16 -> 16 rows, int8/uint8 -> 32.
    return max(8, 32 // np.dtype(dtype).itemsize)


def _gd_kernel(W, HW, S, n_slabs, inv_h, inv_w, edge_in_kernel, *refs):
    if edge_in_kernel:
        # Power-of-two W: build the per-lane edge mask in-kernel (no HBM input).
        x_ref, m_ref, out_ref, acc_ref = refs
        lane = lax.broadcasted_iota(jnp.int32, (1, HW), 1)
        edge = (lane & (W - 1)) != (W - 1)          # True except at w == W-1
    else:
        x_ref, m_ref, e_ref, out_ref, acc_ref = refs
        edge = e_ref[...] > 0.5                     # (1, HW)

    i = pl.program_id(1)  # inner (reduction) grid axis

    @pl.when(i == 0)
    def _():
        acc_ref[...] = jnp.zeros_like(acc_ref)

    def slab(x, m):
        # Circular forward difference along H:
        #   flat index h*W + w  ->  ((h+1) % H, w)  ==  lane roll by -W
        #   (exact for every position, including the wrap row h == H-1).
        h_next = pltpu.roll(x, shift=HW - W, axis=1)
        # Circular forward difference along W: roll by -1 gives x[h, w+1] for
        # w < W-1; at w == W-1 the wrap value x[h, 0] comes from roll +(W-1).
        w_next = pltpu.roll(x, shift=HW - 1, axis=1)
        w_wrap = pltpu.roll(x, shift=W - 1, axis=1)
        h_g = h_next - x
        w_g = jnp.where(edge, w_next, w_wrap) - x
        # Fused, pre-scaled contribution (1/count_h, 1/count_w, 1/B baked in).
        contrib = m * (h_g * h_g * inv_h + w_g * w_g * inv_w)
        # Only a cheap sublane partial reduce per slab; the cross-lane reduce
        # is deferred to the epilogue.
        acc_ref[...] += jnp.sum(contrib, axis=0, keepdims=True)

    if n_slabs == 1:
        slab(x_ref[...].astype(jnp.float32), m_ref[...].astype(jnp.float32))
    else:
        # Decouple DMA block size (T rows) from compute working set (S rows).
        @pl.loop(0, n_slabs)
        def _(s):
            r0 = pl.multiple_of(s * S, S)
            slab(x_ref[pl.ds(r0, S), :].astype(jnp.float32),
                 m_ref[pl.ds(r0, S), :].astype(jnp.float32))

    @pl.when(i == pl.num_programs(1) - 1)
    def _():
        out_ref[0, 0] = jnp.sum(acc_ref[...])


def gd_loss(x, mask, *, num_splits=1, core_parallel=False,
            vmem_budget_bytes=12 * 1024 * 1024,
            slab_temp_budget_bytes=2 * 1024 * 1024,
            max_slab_rows=256,
            vmem_limit_bytes=32 * 1024 * 1024):
    """Pallas implementation of GDLoss.forward(x, mask). x, mask: (B, C, H, W).

    Pass x/mask in their producer dtypes (e.g. bf16 x, int8 mask) to cut HBM
    traffic; the kernel casts to f32 internally.  On v7x use num_splits=2,
    core_parallel=True; on v5e/v6e keep the defaults (single TensorCore).
    """
    B, C, H, W = x.shape
    N = B * C
    HW = H * W

    xf = x.reshape(N, HW)
    mf = mask.reshape(N, HW)

    # ---- tile sizing with honest VMEM accounting -------------------------
    sub = max(_sublane_multiple(x.dtype), _sublane_multiple(mask.dtype))
    lanes = _round_up(HW, 128)
    in_row = lanes * (np.dtype(x.dtype).itemsize + np.dtype(mask.dtype).itemsize)
    n_tmp = 10                       # generous count of live f32 temporaries
    tmp_row = lanes * 4 * n_tmp      # per compute (slab) row

    rows_per_split = pl.cdiv(N, num_splits)

    # Slab rows S: bound the in-kernel temporaries; multiple of the packed tile.
    s_fit = max(sub, (slab_temp_budget_bytes // tmp_row) // sub * sub)
    S = min(s_fit, max(sub, max_slab_rows // sub * sub),
            _round_up(rows_per_split, sub))

    # Block rows T: double-buffered inputs + one slab of temps + acc <= budget.
    input_budget = vmem_budget_bytes - S * tmp_row - lanes * 4 * 3
    T = max(S, (input_budget // (2 * in_row)) // S * S)
    T = min(T, _round_up(rows_per_split, S))
    n_slabs = T // S

    nb_per_split = pl.cdiv(rows_per_split, T)
    n_pad = num_splits * nb_per_split * T
    if n_pad != N:
        pad = n_pad - N
        xf = jnp.pad(xf, ((0, pad), (0, 0)))
        mf = jnp.pad(mf, ((0, pad), (0, 0)))   # zero mask -> zero contribution

    # Glue math baked into the kernel as compile-time constants.
    count_h = C * (H - 1) * W
    count_w = C * H * (W - 1)
    inv_h = 1.0 / (count_h * B)
    inv_w = 1.0 / (count_w * B)

    edge_in_kernel = (W & (W - 1)) == 0        # power-of-two W -> iota & (W-1)
    kernel = functools.partial(_gd_kernel, W, HW, S, n_slabs,
                               inv_h, inv_w, edge_in_kernel)

    in_specs = [
        pl.BlockSpec((T, HW), lambda p, i: (p * nb_per_split + i, 0)),
        pl.BlockSpec((T, HW), lambda p, i: (p * nb_per_split + i, 0)),
    ]
    inputs = [xf, mf]
    if not edge_in_kernel:
        # Resident (1, HW) edge mask; its block index never changes -> one DMA.
        edge = (np.arange(HW) % W != (W - 1)).astype(np.float32).reshape(1, HW)
        inputs.append(jnp.asarray(edge))
        in_specs.append(pl.BlockSpec((1, HW), lambda p, i: (0, 0)))

    if core_parallel and num_splits > 1:
        dim_sem = (pltpu.CORE_PARALLEL, pltpu.ARBITRARY)   # v7x: 2 TensorCores
    else:
        dim_sem = ("parallel", "arbitrary")

    bytes_accessed = (N * HW * (np.dtype(x.dtype).itemsize
                                + np.dtype(mask.dtype).itemsize)
                      + num_splits * 4)
    cost = pl.CostEstimate(flops=12 * N * HW, transcendentals=0,
                           bytes_accessed=bytes_accessed)

    partials = pl.pallas_call(
        kernel,
        out_shape=jax.ShapeDtypeStruct((num_splits, 1), jnp.float32),
        grid=(num_splits, nb_per_split),
        in_specs=in_specs,
        out_specs=pl.BlockSpec((1, 1), lambda p, i: (p, 0),
                               memory_space=pltpu.SMEM),
        scratch_shapes=[pltpu.VMEM((1, HW), jnp.float32)],
        compiler_params=pltpu.CompilerParams(
            dimension_semantics=dim_sem,
            vmem_limit_bytes=vmem_limit_bytes),
        cost_estimate=cost,
    )(*inputs)

    return jnp.sum(partials)


def gd_loss_ref(x, mask):
    """Pure-JAX reference matching the PyTorch forward exactly."""
    B, C, H, W = x.shape
    w_g1 = jnp.roll(x, -1, axis=3) - x   # cat((x[...,1:]-x[...,:-1], wrap), 3)
    h_g1 = jnp.roll(x, -1, axis=2) - x   # cat((x[:,:,1:]-x[:,:, :-1], wrap), 2)
    h_tv = jnp.sum(mask * h_g1 * h_g1)
    w_tv = jnp.sum(mask * w_g1 * w_g1)
    count_h = C * (H - 1) * W
    count_w = C * H * (W - 1)
    return (h_tv / count_h + w_tv / count_w) / B


if __name__ == "__main__":
    key = jax.random.PRNGKey(0)
    kx, km = jax.random.split(key)
    B, C, H, W = 2, 4, 16, 16
    x = jax.random.normal(kx, (B, C, H, W), dtype=jnp.float32)
    mask = (jax.random.uniform(km, (B, C, H, W)) > 0.5).astype(jnp.float32)

    # f32 path
    out = jax.block_until_ready(gd_loss(x, mask))
    ref = gd_loss_ref(x, mask)
    np.testing.assert_allclose(np.asarray(out), np.asarray(ref),
                               rtol=2e-5, atol=1e-6)

    # Narrow-dtype path (bf16 activations + int8 mask): ~2.7x fewer HBM bytes,
    # no wrapper-side cast (the kernel promotes to f32 internally).
    x_bf16 = x.astype(jnp.bfloat16)
    mask_i8 = mask.astype(jnp.int8)
    out_n = jax.block_until_ready(gd_loss(x_bf16, mask_i8))
    ref_n = gd_loss_ref(x_bf16.astype(jnp.float32), mask)
    np.testing.assert_allclose(np.asarray(out_n), np.asarray(ref_n),
                               rtol=1e-3, atol=1e-5)

    print("KERNEL_OK")
</pallas_src>

<mosaic_0001>
module attributes {stable_mosaic.version = 11 : i64} {
  func.func @_gd_kernel(%arg0: i32, %arg1: i32, %arg2: memref<8x256xf32, #tpu.memory_space<vmem>>, %arg3: memref<8x256xf32, #tpu.memory_space<vmem>>, %arg4: memref<1x1xf32, #tpu.memory_space<smem>>, %arg5: memref<1x256xf32, #tpu.memory_space<vmem>>) attributes {dimension_semantics = [#tpu.dimension_semantics<parallel>, #tpu.dimension_semantics<arbitrary>], iteration_bounds = array<i64: 1, 1>, scalar_prefetch = 0 : i64, scratch_operands = 1 : i64, tpu.core_type = #tpu.core_type<tc>, window_params = [{transform_indices = @transform_0, window_bounds = array<i64: 8, 256>}, {transform_indices = @transform_1, window_bounds = array<i64: 8, 256>}, {transform_indices = @transform_2, window_bounds = array<i64: 1, 1>}]} {
    %0 = tpu.iota {dimensions = array<i32: 1>} : vector<1x256xi32>
    %c15_i32 = arith.constant 15 : i32
    %1 = vector.broadcast %c15_i32 : i32 to vector<1x256xi32>
    %2 = arith.andi %0, %1 : vector<1x256xi32>
    %c15_i32_0 = arith.constant 15 : i32
    %3 = vector.broadcast %c15_i32_0 : i32 to vector<1x256xi32>
    %4 = arith.cmpi ne, %2, %3 : vector<1x256xi32>
    %c0_i32 = arith.constant 0 : i32
    %5 = arith.cmpi eq, %arg1, %c0_i32 : i32
    %6 = arith.extui %5 : i1 to i32
    %c0_i32_1 = arith.constant 0 : i32
    %7 = arith.cmpi ne, %6, %c0_i32_1 : i32
    scf.if %7 {
      %cst_14 = arith.constant 0.000000e+00 : f32
      %34 = vector.broadcast %cst_14 : f32 to vector<1x256xf32>
      %c0_15 = arith.constant 0 : index
      %c0_16 = arith.constant 0 : index
      %35 = vector.load %arg5[%c0_15, %c0_16] : memref<1x256xf32, #tpu.memory_space<vmem>>, vector<1x256xf32>
      tpu.vector_store %arg5[%c0_15, %c0_16], %34 {strides = array<i32>} : memref<1x256xf32, #tpu.memory_space<vmem>>, vector<1x256xf32>,
    } else {
    }
    %c0 = arith.constant 0 : index
    %c0_2 = arith.constant 0 : index
    %8 = vector.load %arg2[%c0, %c0_2] : memref<8x256xf32, #tpu.memory_space<vmem>>, vector<8x256xf32>
    %c0_3 = arith.constant 0 : index
    %c0_4 = arith.constant 0 : index
    %9 = vector.load %arg3[%c0_3, %c0_4] : memref<8x256xf32, #tpu.memory_space<vmem>>, vector<8x256xf32>
    %c240_i32 = arith.constant 240 : i32
    %10 = tpu.dynamic_rotate %8 by %c240_i32 dim 1 : vector<8x256xf32>, i32 -> vector<8x256xf32>
    %c255_i32 = arith.constant 255 : i32
    %11 = tpu.dynamic_rotate %8 by %c255_i32 dim 1 : vector<8x256xf32>, i32 -> vector<8x256xf32>
    %c15_i32_5 = arith.constant 15 : i32
    %12 = tpu.dynamic_rotate %8 by %c15_i32_5 dim 1 : vector<8x256xf32>, i32 -> vector<8x256xf32>
    %13 = arith.subf %10, %8 : vector<8x256xf32>
    %14 = vector.shape_cast %4 : vector<1x256xi1> to vector<1x256xi1>
    %15 = vector.broadcast %14 : vector<1x256xi1> to vector<8x256xi1>
    %16 = arith.select %15, %11, %12 : vector<8x256xi1>, vector<8x256xf32>
    %17 = arith.subf %16, %8 : vector<8x256xf32>
    %18 = arith.mulf %13, %13 : vector<8x256xf32>
    %cst = arith.constant 5.2083336E-4 : f32
    %19 = vector.broadcast %cst : f32 to vector<8x256xf32>
    %20 = arith.mulf %18, %19 : vector<8x256xf32>
    %21 = arith.mulf %17, %17 : vector<8x256xf32>
    %cst_6 = arith.constant 5.2083336E-4 : f32
    %22 = vector.broadcast %cst_6 : f32 to vector<8x256xf32>
    %23 = arith.mulf %21, %22 : vector<8x256xf32>
    %24 = arith.addf %20, %23 : vector<8x256xf32>
    %25 = arith.mulf %9, %24 : vector<8x256xf32>
    %c0_7 = arith.constant 0 : index
    %c0_8 = arith.constant 0 : index
    %26 = vector.load %arg5[%c0_7, %c0_8] : memref<1x256xf32, #tpu.memory_space<vmem>>, vector<1x256xf32>
    %cst_9 = arith.constant dense<0.000000e+00> : vector<256xf32>
    %27 = vector.multi_reduction <add>, %25, %cst_9 [0] : vector<8x256xf32> to vector<256xf32>
    %28 = vector.shape_cast %27 : vector<256xf32> to vector<1x256xf32>
    %29 = arith.addf %26, %28 : vector<1x256xf32>
    %c0_10 = arith.constant 0 : index
    %c0_11 = arith.constant 0 : index
    %30 = vector.load %arg5[%c0_10, %c0_11] : memref<1x256xf32, #tpu.memory_space<vmem>>, vector<1x256xf32>
    tpu.vector_store %arg5[%c0_10, %c0_11], %29 {strides = array<i32>} : memref<1x256xf32, #tpu.memory_space<vmem>>, vector<1x256xf32>,
    %c0_i32_12 = arith.constant 0 : i32
    %31 = arith.cmpi eq, %arg1, %c0_i32_12 : i32
    %32 = arith.extui %31 : i1 to i32
    %c0_i32_13 = arith.constant 0 : i32
    %33 = arith.cmpi ne, %32, %c0_i32_13 : i32
    scf.if %33 {
      %c0_14 = arith.constant 0 : index
      %c0_15 = arith.constant 0 : index
      %34 = vector.load %arg5[%c0_14, %c0_15] : memref<1x256xf32, #tpu.memory_space<vmem>>, vector<1x256xf32>
      %35 = vector.shape_cast %34 : vector<1x256xf32> to vector<1x1x256xf32>
      %cst_16 = arith.constant dense<0.000000e+00> : vector<1xf32>
      %36 = vector.multi_reduction <add>, %35, %cst_16 [1, 2] : vector<1x1x256xf32> to vector<1xf32>
      %37 = vector.shape_cast %36 : vector<1xf32> to vector<1x1x1xf32>
      %38 = vector.extract %37[0, 0, 0] : f32 from vector<1x1x1xf32>
      %c0_17 = arith.constant 0 : index
      %c0_18 = arith.constant 0 : index
      %39 = memref.load %arg4[%c0_17, %c0_18] : memref<1x1xf32, #tpu.memory_space<smem>>
      memref.store %38, %arg4[%c0_17, %c0_18] : memref<1x1xf32, #tpu.memory_space<smem>>
    } else {
    }
    return
  }
  func.func @transform_0(%arg0: i32, %arg1: i32) -> (i32, i32) {
    %c1_i32 = arith.constant 1 : i32
    %0 = arith.muli %arg0, %c1_i32 : i32
    %1 = arith.addi %0, %arg1 : i32
    %c0_i32 = arith.constant 0 : i32
    %c0_i32_0 = arith.constant 0 : i32
    return %1, %c0_i32 : i32, i32
  }
  func.func @transform_1(%arg0: i32, %arg1: i32) -> (i32, i32) {
    %c1_i32 = arith.constant 1 : i32
    %0 = arith.muli %arg0, %c1_i32 : i32
    %1 = arith.addi %0, %arg1 : i32
    %c0_i32 = arith.constant 0 : i32
    %c0_i32_0 = arith.constant 0 : i32
    return %1, %c0_i32 : i32, i32
  }
  func.func @transform_2(%arg0: i32, %arg1: i32) -> (i32, i32) {
    %c0_i32 = arith.constant 0 : i32
    %c0_i32_0 = arith.constant 0 : i32
    return %arg0, %c0_i32 : i32, i32
  }
}

</mosaic_0001>

<llo_original>
// kernel: tpu_custom_call.1
$region0: #{tpu_custom_call.1}
  #allocation0 [shape = 'u32[]', space=smem, size = 0x4, offset = 0x4, fixed_abs, tag = 'smem constant byte address 0x4 - core index']
  #allocation1 [shape = 'u32[144,128]{1,0:T(1,128)}', space=vmem, size = 0x12000, scoped, tag = 'internal scratch']
  #allocation2 [shape = 'f32[1,256]{1,0:T(1,128)}', space=vmem, size = 0x400, scoped, tag = 'scratch operand']
  %s0 = inlined_call_operand.hbm [shape: f32[8,256], index: 0, kind: input, shape index: {}]
  %s1 = inlined_call_operand.hbm [shape: f32[8,256], index: 1, kind: input, shape index: {}]
  %s2 = inlined_call_operand.hbm [shape: f32[1,1], index: 2, kind: output, shape index: {}]
  %s3 = sld [smem:[#allocation0]]
  $region34: #{tpu_custom_call.1} parent=0
    _
  %s5 = ssub.s32 1, %s3
  %s6 = scalar_select 0, %s5, %s3
  $region1: #{tpu_custom_call.1} parent=0
    #allocation3 [shape = 'u8[8192]{0}', space=vmem, size = 0x2000, scoped, tag = 'input window, operand 0, single buffered']
    #allocation4 [shape = 's32[1]{0}', space=sflag, size = 0x4, scoped, tag = 'scoped memory for tpu_custom_call.1']
    #allocation5 [shape = 's32[1]{0}', space=sflag, size = 0x4, scoped, tag = 'scoped memory for tpu_custom_call.1']
    #allocation6 [shape = 'u8[8192]{0}', space=vmem, size = 0x2000, scoped, tag = 'input window, operand 1, single buffered']
    #allocation7 [shape = 's32[1]{0}', space=sflag, size = 0x4, scoped, tag = 'scoped memory for tpu_custom_call.1']
    #allocation8 [shape = 'u8[512]{0}', space=smem, size = 0x200, scoped, tag = 'output window, operand 0, single buffered']
    %7 = vsyncpa [#allocation4], 0
    %8 = vsyncpa [#allocation7], 0
    %9 = vsyncpa [#allocation5], 0
    // Predicated region
    $region2: #{tpu_custom_call.1} parent=1 // pred_check
      _
    $region3: #{tpu_custom_call.1} parent=1 // pred_check_branch
      %11 = sbr.rel (0) target = $region5
    $region4: #{tpu_custom_call.1} parent=1 // pred_region
      %s12 = sadd.s32 0, 0
      %s14 = ssub.s32 256, 256
      %15 = vsyncadd [#allocation4], %s14
      %s16 = smul.addr %s12, 2
      %s17 = smul.addr %s16, 128
      %s18 = scalar_lea.hbm %s0, %s17
      %s20 = sshll.u32 [#allocation3], 4
      %s21 = int_to_ptr.vmem [resolvable:$true] %s20
      %23 = dma.hbm_to_vmem [thread:$0]  %s18, 256, %s21, [#allocation4]
    $region5: #{tpu_custom_call.1} parent=1 // pred_fallthru
      _
    // Predicated region
    $region6: #{tpu_custom_call.1} parent=1 // pred_check
      _
    $region7: #{tpu_custom_call.1} parent=1 // pred_check_branch
      %25 = sbr.rel (0) target = $region9
    $region8: #{tpu_custom_call.1} parent=1 // pred_region
      %s26 = sadd.s32 0, 0
      %s28 = ssub.s32 256, 256
      %29 = vsyncadd [#allocation7], %s28
      %s30 = smul.addr %s26, 2
      %s31 = smul.addr %s30, 128
      %s32 = scalar_lea.hbm %s1, %s31
      %s34 = sshll.u32 [#allocation6], 4
      %s35 = int_to_ptr.vmem [resolvable:$true] %s34
      %37 = dma.hbm_to_vmem [thread:$0]  %s32, 256, %s35, [#allocation7]
    $region9: #{tpu_custom_call.1} parent=1 // pred_fallthru
      _
    // Predicated region
    $region10: #{tpu_custom_call.1} parent=1 // pred_check
      _
    $region11: #{tpu_custom_call.1} parent=1 // pred_check_branch
      %39 = sbr.rel (0) target = $region13
    $region12: #{tpu_custom_call.1} parent=1 // pred_region
      %40 = dma.done [#allocation4], 256
    $region13: #{tpu_custom_call.1} parent=1 // pred_fallthru
      _
    // Predicated region
    $region14: #{tpu_custom_call.1} parent=1 // pred_check
      _
    $region15: #{tpu_custom_call.1} parent=1 // pred_check_branch
      %42 = sbr.rel (0) target = $region17
    $region16: #{tpu_custom_call.1} parent=1 // pred_region
      %43 = dma.done [#allocation7], 256
    $region17: #{tpu_custom_call.1} parent=1 // pred_fallthru
      _
    %s44 = sadd.s32 0, 0
    %s45 = sadd.s32 0, 0
    %v46 = vlaneseq
    %v47 = vand.u32 %v46, 127
    %v48 = vadd.s32 %v47, 128
    %v49 = vand.u32 %v47, 15
    %v50 = vand.u32 %v48, 15
    %vm51 = vcmp.ne.s32.totalorder %v49, 15
    %vm52 = vcmp.ne.s32.totalorder %v50, 15
    %p53 = scmp.eq.s32.totalorder 0, 0
    // Predicated region
    $region18: #{tpu_custom_call.1} parent=1 // pred_check
      %p54 = pneg %p53
    $region19: #{tpu_custom_call.1} parent=1 // pred_check_branch
      %56 = sbr.rel (%p54) target = $region21
    $region20: #{tpu_custom_call.1} parent=1 // pred_region
      %v57 = vlaneseq
      %vm58 = vcmp.ge.s32.totalorder %v57, 0
      %vm59 = vcmp.lt.s32.totalorder %v57, 256
      %vm60 = vmand %vm58, %vm59
      %61 = vst.msk [vmem:[#allocation2] sm:$0x3] %vm60, 0.0
    $region21: #{tpu_custom_call.1} parent=1 // pred_fallthru
      _
    %v62 = vld [vmem:[#allocation3] sm:$0xff]
    %v63 = vld [vmem:[#allocation3 + $0x8] sm:$0xff]
    %v64 = vld [vmem:[#allocation6] sm:$0xff]
    %v65 = vld [vmem:[#allocation6 + $0x8] sm:$0xff]
    %66 = vrot.lane.b32.xlu0 %v62, 112
    %v67 = vpop.permute.xlu0 %66
    %68 = vrot.lane.b32.xlu0 %v63, 112
    %v69 = vpop.permute.xlu0 %68
    %vm70 = vcmp.lt.s32.totalorder %v47, 112
    %v71 = vsel %vm70, %v67, %v69
    %v72 = vsel %vm70, %v69, %v67
    %73 = vrot.lane.b32.xlu0 %v62, 127
    %v74 = vpop.permute.xlu0 %73
    %75 = vrot.lane.b32.xlu0 %v63, 127
    %v76 = vpop.permute.xlu0 %75
    %vm77 = vcmp.lt.s32.totalorder %v47, 127
    %v78 = vsel %vm77, %v74, %v76
    %v79 = vsel %vm77, %v76, %v74
    %80 = vrot.lane.b32.xlu0 %v62, 15
    %v81 = vpop.permute.xlu0 %80
    %82 = vrot.lane.b32.xlu0 %v63, 15
    %v83 = vpop.permute.xlu0 %82
    %vm84 = vcmp.lt.s32.totalorder %v47, 15
    %v85 = vsel %vm84, %v81, %v83
    %v86 = vsel %vm84, %v83, %v81
    %v87 = vsub.f32 %v71, %v62
    %v88 = vsub.f32 %v72, %v63
    %v89 = vsel %vm51, 1, 0
    %v90 = vsel %vm52, 1, 0
    %vm91 = vcmp.eq.s32.totalorder %v89, 1
    %vm92 = vcmp.eq.s32.totalorder %v90, 1
    %v93 = vsel %vm91, %v78, %v86
    %v94 = vsel %vm92, %v79, %v85
    %v95 = vsub.f32 %v93, %v62
    %v96 = vsub.f32 %v94, %v63
    %v97 = vmul.f32 %v87, %v87
    %v98 = vmul.f32 %v88, %v88
    %v99 = vmul.f32 %v97, 0.00052083336
    %v100 = vmul.f32 %v98, 0.00052083336
    %v101 = vmul.f32 %v95, %v95
    %v102 = vmul.f32 %v96, %v96
    %v103 = vmul.f32 %v101, 0.00052083336
    %v104 = vmul.f32 %v102, 0.00052083336
    %v105 = vadd.f32 %v99, %v103
    %v106 = vadd.f32 %v100, %v104
    %v107 = vmul.f32 %v64, %v105
    %v108 = vmul.f32 %v65, %v106
    %v109 = vld [vmem:[#allocation2] sm:$0x3]
    %v110 = vrot.slane %v107, 4
    %v111 = vadd.f32 %v107, %v110
    %v112 = vrot.slane %v111, 2
    %v113 = vadd.f32 %v111, %v112
    %v114 = vrot.slane %v113, 1
    %v115 = vadd.f32 %v113, %v114
    %v116 = vrot.slane %v108, 4
    %v117 = vadd.f32 %v108, %v116
    %v118 = vrot.slane %v117, 2
    %v119 = vadd.f32 %v117, %v118
    %v120 = vrot.slane %v119, 1
    %v121 = vadd.f32 %v119, %v120
    %v124 = vcombine.low %v115, %v121
    %v126 = vunpack.c.l.s4 1966171168
    %v127 = vunpack.c.0.s8 %v126
    %v128 = vlaneseq
    %v129 = vshrl.u32 %v128, 7
    %v130 = vsub.s32 %v127, %v129
    %v131 = vrot.slane %v124, %v130
    %v133 = vunpack.c.l.s4 1966171168
    %v134 = vunpack.c.0.s8 %v133
    %v135 = vlaneseq
    %v136 = vshrl.u32 %v135, 7
    %v137 = vsub.s32 %v134, %v136
    %v138 = vrot.slane %v131, %v137
    %v140 = vadd.f32 %v109, %v138
    %v141 = vlaneseq
    %vm142 = vcmp.ge.s32.totalorder %v141, 0
    %vm143 = vcmp.lt.s32.totalorder %v141, 256
    %vm144 = vmand %vm142, %vm143
    %145 = vst.msk [vmem:[#allocation2] sm:$0x3] %vm144, %v140
    // Predicated region
    $region22: #{tpu_custom_call.1} parent=1 // pred_check
      %p146 = pneg %p53
    $region23: #{tpu_custom_call.1} parent=1 // pred_check_branch
      %148 = sbr.rel (%p146) target = $region25
    $region24: #{tpu_custom_call.1} parent=1 // pred_region
      %v149 = vld [vmem:[#allocation2] sm:$0x3]
      %v151 = vlaneseq
      %v152 = vshrl.u32 %v151, 7
      %v153 = vsub.s32 0, %v152
      %v154 = vrot.slane %v149, %v153
      %v155 = vlaneseq
      %v156 = vshrl.u32 %v155, 7
      %v157 = vsub.s32 1, %v156
      %v158 = vrot.slane %v149, %v157
      %vm161 = vcmask 1040384
      %v162 = vsel %vm161, %v154, 0.0
      %v163 = vsel %vm161, %v158, 0.0
      %v164 = vadd.f32 %v162, %v163
      %165 = vadd.xlane.f32.xlu0 %v164
      %v166 = vpop.xlane.xlu0 %165
      %v167 = vrot.slane %v166, 4
      %v168 = vadd.f32 %v166, %v167
      %v169 = vrot.slane %v168, 2
      %v170 = vadd.f32 %v168, %v169
      %v171 = vrot.slane %v170, 1
      %v172 = vadd.f32 %v170, %v171
      %s173 = vtos %v172
      %s174 = scalar_lea.smem [#allocation8], 0
      %175 = sst [smem:[%s174]] %s173
    $region25: #{tpu_custom_call.1} parent=1 // pred_fallthru
      _
    // Predicated region
    $region26: #{tpu_custom_call.1} parent=1 // pred_check
      _
    $region27: #{tpu_custom_call.1} parent=1 // pred_check_branch
      %177 = sbr.rel (0) target = $region29
    $region28: #{tpu_custom_call.1} parent=1 // pred_region
      %s179 = ssub.s32 16, 16
      %180 = vsyncadd [#allocation5], %s179
      %183 = dma.smem_to_hbm [#allocation8], 16, %s2, [#allocation5]
    $region29: #{tpu_custom_call.1} parent=1 // pred_fallthru
      _
    // Predicated region
    $region30: #{tpu_custom_call.1} parent=1 // pred_check
      _
    $region31: #{tpu_custom_call.1} parent=1 // pred_check_branch
      %185 = sbr.rel (0) target = $region33
    $region32: #{tpu_custom_call.1} parent=1 // pred_region
      %186 = dma.done [#allocation5], 16
    $region33: #{tpu_custom_call.1} parent=1 // pred_fallthru
      _
    %187 = sfence
    %188 = vsyncpa [#allocation4], 1
    %189 = vsyncpa [#allocation7], 1
    %190 = vsyncpa [#allocation5], 1

</llo_original>
